<compile_context>
chip_gen: v6e
topology: v6e:2x2x1
jax: 0.10.0
libtpu: 0.0.40
codegen_flags: <defaults>
</compile_context>

<pallas_src>
import functools

import numpy as np

import jax
import jax.numpy as jnp
from jax import lax
from jax.experimental import pallas as pl
from jax.experimental.pallas import tpu as pltpu


def _graph_nonlocal_kernel(x_ref, xg_ref, wth_ref, bth_ref, wpg_ref, bpg_ref,
                           ww_ref, shift_ref, o_ref, *,
                           group_size, n_pool, n_pool_pad, ci, mxu_dtype, approx_recip):
    """One batch element per grid step.

    x_ref:   (1, N,  C)   nodes in ORIGINAL order (theta / residual path)
    xg_ref:  (1, Ng, C)   nodes in grouped k-major order, pooled axis padded to n_pool_pad
    wth_ref: (C, Ci)      theta 1x1-conv weight
    wpg_ref: (C, 2*Ci)    fused [phi | g] 1x1-conv weight
    ww_ref:  (Ci, C)      output 1x1-conv weight with BatchNorm scale folded in
    shift_ref: (1, C)     conv-W bias + BatchNorm shift, folded
    """
    xb = x_ref[0]                                   # (N, C)
    xgb = xg_ref[0]                                 # (Ng, C)

    if mxu_dtype is not None:
        xb_mm, xgb_mm = xb.astype(mxu_dtype), xgb.astype(mxu_dtype)
    else:
        xb_mm, xgb_mm = xb, xgb

    # 1x1 convs on the MXU (f32 accumulation); biases stay f32.
    theta = jnp.dot(xb_mm, wth_ref[...], preferred_element_type=jnp.float32) + bth_ref[...]
    pg = jnp.dot(xgb_mm, wpg_ref[...], preferred_element_type=jnp.float32) + bpg_ref[...]

    # MaxPool1d(kernel=stride=group_size): xg rows are k-major with the pooled axis padded
    # to a sublane multiple, so the k-th member of every pooled position is the aligned
    # contiguous slice [k*n_pool_pad, (k+1)*n_pool_pad).  Pure VPU maxima.
    pooled = pg[0:n_pool_pad, :]
    for k in range(1, group_size):                   # group_size is small & static
        pooled = jnp.maximum(pooled, pg[k * n_pool_pad:(k + 1) * n_pool_pad, :])
    phi_p = pooled[:, :ci]                           # (n_pool_pad, Ci)
    g_p = pooled[:, ci:]                             # (n_pool_pad, Ci)

    # Attention: theta @ phi^T without materializing the transpose.
    if mxu_dtype is not None:
        theta_mm, phi_mm = theta.astype(mxu_dtype), phi_p.astype(mxu_dtype)
    else:
        theta_mm, phi_mm = theta, phi_p
    f = lax.dot_general(theta_mm, phi_mm, (((1,), (1,)), ((), ())),
                        preferred_element_type=jnp.float32)        # (N, n_pool_pad)

    if n_pool_pad != n_pool:
        # Mask padded pooled columns before softmax; exp underflows to exactly 0 so the
        # result is exact (padded g rows are multiplied by exactly-zero attention).
        col = lax.broadcasted_iota(jnp.int32, f.shape, 1)
        f = jnp.where(col < n_pool, f, -1e30)

    # Softmax in f32 (elementwise stays f32: v5e has no bf16 VALU/EUP).
    f = f - jnp.max(f, axis=-1, keepdims=True)
    ef = jnp.exp(f)
    denom = jnp.sum(ef, axis=-1, keepdims=True)
    if approx_recip:
        attn = ef * pl.reciprocal(denom, approx=True)
    else:
        attn = ef / denom

    if mxu_dtype is not None:
        y = jnp.dot(attn.astype(mxu_dtype), g_p.astype(mxu_dtype),
                    preferred_element_type=jnp.float32)            # (N, Ci)
        y_mm = y.astype(mxu_dtype)
    else:
        y = jnp.dot(attn, g_p, preferred_element_type=jnp.float32)
        y_mm = y

    # Output 1x1 conv with BN scale folded into the weight and bias+BN folded into shift,
    # plus the residual — written straight to this step's output slice (no intermediates).
    wy = jnp.dot(y_mm, ww_ref[...], preferred_element_type=jnp.float32) + shift_ref[...]
    o_ref[0] = (wy + xb).astype(o_ref.dtype)


def graph_nonlocal_forward(x, params, grouped_order, restored_order, group_size,
                           eps=1e-5, mxu_dtype=None, approx_recip=True):
    """mxu_dtype=jnp.bfloat16 casts matmul operands only (recommended on v6e/v7x at
    production sizes); default f32 keeps the toy-size reference check tight."""
    B, N, C = x.shape
    Ci = params["w_theta"].shape[1]
    assert N % group_size == 0, "MaxPool1d(group_size) requires N % group_size == 0"
    n_pool = N // group_size
    n_pool_pad = ((n_pool + 7) // 8) * 8          # sublane-align the pooled axis
    Ng = group_size * n_pool_pad                  # == N at production (n_pool % 8 == 0)

    # NOTE: order arrays must be concrete (decided at trace time); this wrapper is not
    # jittable with traced grouped_order/restored_order.
    go = np.asarray(jax.device_get(grouped_order)).astype(np.int64)
    ro = np.asarray(jax.device_get(restored_order)).astype(np.int64)

    # In SemGCN restored_order is the inverse permutation of grouped_order, so the input
    # gather / output scatter cancel for the theta / residual / BN paths; only the MaxPool
    # grouping needs the node permutation, which is applied to a second copy of x here
    # (an O(N*C) XLA gather in HBM — no (N,N) one-hot matmul in the kernel).
    fused = np.array_equal(go[ro], np.arange(N))
    if fused:
        x_in = x
        base = go
    else:
        # Fallback (non-inverse orders): gather/scatter in the wrapper as the module does.
        x_in = x[:, go, :]
        base = np.arange(N)

    # k-major pooled layout, padded: member k of pooled position j sits at row
    # k*n_pool_pad + j; pad rows point at an arbitrary valid node (masked before softmax).
    src = np.full((group_size, n_pool_pad), base[0], dtype=np.int64)
    src[:, :n_pool] = base.reshape(n_pool, group_size).T
    src = src.reshape(-1)
    x_g = x_in[:, jnp.asarray(src), :]            # (B, Ng, C)

    # Host-side parameter folding (f32, one-time), then optional cast of MXU operands.
    scale = params["bn_gamma"] * lax.rsqrt(params["bn_var"] + eps)            # (1, C)
    w_w = params["w_w"] * scale                                               # (Ci, C)
    shift = (params["b_w"] - params["bn_mean"]) * scale + params["bn_beta"]   # (1, C)
    w_th = params["w_theta"]
    b_th = params["b_theta"]
    w_pg = jnp.concatenate([params["w_phi"], params["w_g"]], axis=1)          # (C, 2*Ci)
    b_pg = jnp.concatenate([params["b_phi"], params["b_g"]], axis=1)          # (1, 2*Ci)
    if mxu_dtype is not None:
        w_th = w_th.astype(mxu_dtype)
        w_pg = w_pg.astype(mxu_dtype)
        w_w = w_w.astype(mxu_dtype)

    # Explicit VMEM budget: per-step blocks (x, x_g, out) x 2 double-buffers + resident
    # weights, generous floor / ceiling.  Far under the 32 MiB scoped default on v7x.
    itemsize = 4
    blk_bytes = (N * C + Ng * C + N * C) * itemsize
    w_bytes = (C * Ci + Ci + C * 2 * Ci + 2 * Ci + Ci * C + C) * itemsize
    vmem_limit = int(min(32 << 20, max(8 << 20, 4 * blk_bytes + 2 * w_bytes + (1 << 20))))

    kernel = functools.partial(
        _graph_nonlocal_kernel, group_size=group_size, n_pool=n_pool,
        n_pool_pad=n_pool_pad, ci=Ci, mxu_dtype=mxu_dtype, approx_recip=approx_recip)

    # TODO(synk): at production N, additionally tile the node axis (grid=(B, N//tn)) and
    # pad hid_dim toward 128 lanes so the final store is unmasked; at C=32 the masked
    # store is accepted.
    out = pl.pallas_call(
        kernel,
        out_shape=jax.ShapeDtypeStruct((B, N, C), x.dtype),
        grid=(B,),
        in_specs=[
            pl.BlockSpec((1, N, C), lambda b: (b, 0, 0)),     # x  (original order)
            pl.BlockSpec((1, Ng, C), lambda b: (b, 0, 0)),    # x grouped, k-major padded
            pl.BlockSpec((C, Ci), lambda b: (0, 0)),          # w_theta   (resident)
            pl.BlockSpec((1, Ci), lambda b: (0, 0)),          # b_theta
            pl.BlockSpec((C, 2 * Ci), lambda b: (0, 0)),      # w_[phi|g]
            pl.BlockSpec((1, 2 * Ci), lambda b: (0, 0)),      # b_[phi|g]
            pl.BlockSpec((Ci, C), lambda b: (0, 0)),          # w_W * bn_scale
            pl.BlockSpec((1, C), lambda b: (0, 0)),           # folded shift
        ],
        out_specs=pl.BlockSpec((1, N, C), lambda b: (b, 0, 0)),
        compiler_params=pltpu.CompilerParams(
            dimension_semantics=("parallel",),                # 2nd TC on v7x
            vmem_limit_bytes=vmem_limit),
    )(x_in, x_g, w_th, b_th, w_pg, b_pg, w_w, shift)

    if not fused:
        out = out[:, ro, :]
    return out


def reference_forward(x, params, grouped_order, restored_order, group_size, eps=1e-5):
    xg = x[:, grouped_order, :]

    def conv1x1(a, w, b):
        return jnp.einsum("bnc,co->bno", a, w) + b[0]

    theta = conv1x1(xg, params["w_theta"], params["b_theta"])
    phi_f = conv1x1(xg, params["w_phi"], params["b_phi"])
    g_f = conv1x1(xg, params["w_g"], params["b_g"])

    B, N, Ci = theta.shape
    n_pool = N // group_size
    phi = jnp.max(phi_f.reshape(B, n_pool, group_size, Ci), axis=2)
    g = jnp.max(g_f.reshape(B, n_pool, group_size, Ci), axis=2)

    f = jnp.einsum("bni,bmi->bnm", theta, phi)
    f = jax.nn.softmax(f, axis=-1)
    y = jnp.einsum("bnm,bmi->bni", f, g)

    wy = jnp.einsum("bni,ic->bnc", y, params["w_w"]) + params["b_w"][0]
    wy = ((wy - params["bn_mean"][0]) * lax.rsqrt(params["bn_var"][0] + eps)
          * params["bn_gamma"][0] + params["bn_beta"][0])
    out = wy + xg
    return out[:, restored_order, :]


if __name__ == "__main__":
    B, N, hid_dim, group_size = 2, 16, 32, 4
    Ci = hid_dim // 2

    key = jax.random.PRNGKey(0)
    keys = jax.random.split(key, 16)

    # grouped_order is a permutation of nodes, restored_order its inverse (as in SemGCN).
    grouped_order = jax.random.permutation(keys[0], N)
    restored_order = jnp.argsort(grouped_order)

    def w(k, shape, scale=0.1):
        return scale * jax.random.normal(k, shape, dtype=jnp.float32)

    params = {
        "w_theta": w(keys[1], (hid_dim, Ci)),
        "b_theta": w(keys[2], (1, Ci)),
        "w_phi":   w(keys[3], (hid_dim, Ci)),
        "b_phi":   w(keys[4], (1, Ci)),
        "w_g":     w(keys[5], (hid_dim, Ci)),
        "b_g":     w(keys[6], (1, Ci)),
        "w_w":     w(keys[7], (Ci, hid_dim)),
        "b_w":     w(keys[8], (1, hid_dim)),
        # NOTE: PyTorch inits BN(weight)=0, BN(bias)=0 which makes the block an identity;
        # nonzero deterministic values are used so the kernel's compute path is exercised.
        "bn_gamma": 1.0 + w(keys[9], (1, hid_dim)),
        "bn_beta":  w(keys[10], (1, hid_dim)),
        "bn_mean":  w(keys[11], (1, hid_dim)),
        "bn_var":   jax.random.uniform(keys[12], (1, hid_dim), dtype=jnp.float32,
                                       minval=0.5, maxval=1.5),
    }

    x = jax.random.normal(keys[13], (B, N, hid_dim), dtype=jnp.float32)

    out = graph_nonlocal_forward(x, params, grouped_order, restored_order, group_size)
    out = jax.block_until_ready(out)

    ref = reference_forward(x, params, grouped_order, restored_order, group_size)
    assert out.shape == (B, N, hid_dim)
    # Slightly relaxed tolerance: softmax denominator uses the EUP approximate reciprocal.
    assert jnp.allclose(out, ref, rtol=2e-3, atol=2e-3), "mismatch vs. pure-JAX reference"

    print("KERNEL_OK")
</pallas_src>

<mosaic_0001>
module attributes {stable_mosaic.version = 11 : i64} {
  func.func @_graph_nonlocal_kernel(%arg0: i32, %arg1: memref<1x16x32xf32, #tpu.memory_space<vmem>>, %arg2: memref<1x32x32xf32, #tpu.memory_space<vmem>>, %arg3: memref<32x16xf32, #tpu.memory_space<vmem>>, %arg4: memref<1x16xf32, #tpu.memory_space<vmem>>, %arg5: memref<32x32xf32, #tpu.memory_space<vmem>>, %arg6: memref<1x32xf32, #tpu.memory_space<vmem>>, %arg7: memref<16x32xf32, #tpu.memory_space<vmem>>, %arg8: memref<1x32xf32, #tpu.memory_space<vmem>>, %arg9: memref<1x16x32xf32, #tpu.memory_space<vmem>>) attributes {dimension_semantics = [#tpu.dimension_semantics<parallel>], iteration_bounds = array<i64: 2>, scalar_prefetch = 0 : i64, scratch_operands = 0 : i64, tpu.core_type = #tpu.core_type<tc>, window_params = [{transform_indices = @transform_0, window_bounds = array<i64: 1, 16, 32>}, {transform_indices = @transform_1, window_bounds = array<i64: 1, 32, 32>}, {pipeline_mode = #tpu.pipeline_mode<synchronous>, transform_indices = @transform_2, window_bounds = array<i64: 32, 16>}, {pipeline_mode = #tpu.pipeline_mode<synchronous>, transform_indices = @transform_3, window_bounds = array<i64: 1, 16>}, {pipeline_mode = #tpu.pipeline_mode<synchronous>, transform_indices = @transform_4, window_bounds = array<i64: 32, 32>}, {pipeline_mode = #tpu.pipeline_mode<synchronous>, transform_indices = @transform_5, window_bounds = array<i64: 1, 32>}, {pipeline_mode = #tpu.pipeline_mode<synchronous>, transform_indices = @transform_6, window_bounds = array<i64: 16, 32>}, {pipeline_mode = #tpu.pipeline_mode<synchronous>, transform_indices = @transform_7, window_bounds = array<i64: 1, 32>}, {transform_indices = @transform_8, window_bounds = array<i64: 1, 16, 32>}]} {
    %c0 = arith.constant 0 : index
    %c0_0 = arith.constant 0 : index
    %c0_1 = arith.constant 0 : index
    %0 = vector.load %arg1[%c0, %c0_0, %c0_1] : memref<1x16x32xf32, #tpu.memory_space<vmem>>, vector<1x16x32xf32>
    %1 = vector.shape_cast %0 : vector<1x16x32xf32> to vector<16x32xf32>
    %c0_2 = arith.constant 0 : index
    %c0_3 = arith.constant 0 : index
    %c0_4 = arith.constant 0 : index
    %2 = vector.load %arg2[%c0_2, %c0_3, %c0_4] : memref<1x32x32xf32, #tpu.memory_space<vmem>>, vector<1x32x32xf32>
    %3 = vector.shape_cast %2 : vector<1x32x32xf32> to vector<32x32xf32>
    %c0_5 = arith.constant 0 : index
    %c0_6 = arith.constant 0 : index
    %4 = vector.load %arg3[%c0_5, %c0_6] : memref<32x16xf32, #tpu.memory_space<vmem>>, vector<32x16xf32>
    %cst = arith.constant dense<0.000000e+00> : vector<16x16xf32>
    %5 = tpu.matmul %1, %4, %cst {dimension_numbers = #tpu.dot_dimension_numbers<[1], [0], [0], [1], [0, 0, 1, 1], [], []>} : vector<16x32xf32>, vector<32x16xf32>, vector<16x16xf32> -> vector<16x16xf32>
    %c0_7 = arith.constant 0 : index
    %c0_8 = arith.constant 0 : index
    %6 = vector.load %arg4[%c0_7, %c0_8] : memref<1x16xf32, #tpu.memory_space<vmem>>, vector<1x16xf32>
    %7 = vector.broadcast %6 : vector<1x16xf32> to vector<16x16xf32>
    %8 = arith.addf %5, %7 : vector<16x16xf32>
    %c0_9 = arith.constant 0 : index
    %c0_10 = arith.constant 0 : index
    %9 = vector.load %arg5[%c0_9, %c0_10] : memref<32x32xf32, #tpu.memory_space<vmem>>, vector<32x32xf32>
    %cst_11 = arith.constant dense<0.000000e+00> : vector<32x32xf32>
    %10 = tpu.matmul %3, %9, %cst_11 {dimension_numbers = #tpu.dot_dimension_numbers<[1], [0], [0], [1], [0, 0, 1, 1], [], []>} : vector<32x32xf32>, vector<32x32xf32>, vector<32x32xf32> -> vector<32x32xf32>
    %c0_12 = arith.constant 0 : index
    %c0_13 = arith.constant 0 : index
    %11 = vector.load %arg6[%c0_12, %c0_13] : memref<1x32xf32, #tpu.memory_space<vmem>>, vector<1x32xf32>
    %12 = vector.broadcast %11 : vector<1x32xf32> to vector<32x32xf32>
    %13 = arith.addf %10, %12 : vector<32x32xf32>
    %14 = vector.extract_strided_slice %13 {offsets = [0, 0], sizes = [8, 32], strides = [1, 1]} : vector<32x32xf32> to vector<8x32xf32>
    %15 = vector.extract_strided_slice %13 {offsets = [8, 0], sizes = [8, 32], strides = [1, 1]} : vector<32x32xf32> to vector<8x32xf32>
    %16 = arith.maximumf %14, %15 : vector<8x32xf32>
    %17 = vector.extract_strided_slice %13 {offsets = [16, 0], sizes = [8, 32], strides = [1, 1]} : vector<32x32xf32> to vector<8x32xf32>
    %18 = arith.maximumf %16, %17 : vector<8x32xf32>
    %19 = vector.extract_strided_slice %13 {offsets = [24, 0], sizes = [8, 32], strides = [1, 1]} : vector<32x32xf32> to vector<8x32xf32>
    %20 = arith.maximumf %18, %19 : vector<8x32xf32>
    %21 = vector.extract_strided_slice %20 {offsets = [0, 0], sizes = [8, 16], strides = [1, 1]} : vector<8x32xf32> to vector<8x16xf32>
    %22 = vector.extract_strided_slice %20 {offsets = [0, 16], sizes = [8, 16], strides = [1, 1]} : vector<8x32xf32> to vector<8x16xf32>
    %cst_14 = arith.constant dense<0.000000e+00> : vector<16x8xf32>
    %23 = tpu.matmul %8, %21, %cst_14 {dimension_numbers = #tpu.dot_dimension_numbers<[1], [1], [0], [0], [0, 0, 1, 0], [], []>} : vector<16x16xf32>, vector<8x16xf32>, vector<16x8xf32> -> vector<16x8xf32>
    %24 = tpu.iota {dimensions = array<i32: 1>} : vector<16x8xi32>
    %c4_i32 = arith.constant 4 : i32
    %25 = vector.broadcast %c4_i32 : i32 to vector<16x8xi32>
    %26 = arith.cmpi slt, %24, %25 : vector<16x8xi32>
    %cst_15 = arith.constant -1.000000e+30 : f32
    %27 = vector.broadcast %cst_15 : f32 to vector<16x8xf32>
    %28 = arith.select %26, %23, %27 : vector<16x8xi1>, vector<16x8xf32>
    %cst_16 = arith.constant dense<0xFF800000> : vector<16xf32>
    %29 = vector.multi_reduction <maximumf>, %28, %cst_16 [1] : vector<16x8xf32> to vector<16xf32>
    %30 = vector.shape_cast %29 : vector<16xf32> to vector<16x1xf32>
    %31 = vector.broadcast %30 : vector<16x1xf32> to vector<16x8xf32>
    %32 = arith.subf %28, %31 : vector<16x8xf32>
    %33 = math.exp %32 : vector<16x8xf32>
    %cst_17 = arith.constant dense<0.000000e+00> : vector<16xf32>
    %34 = vector.multi_reduction <add>, %33, %cst_17 [1] : vector<16x8xf32> to vector<16xf32>
    %35 = vector.shape_cast %34 : vector<16xf32> to vector<16x1xf32>
    %36 = tpu.reciprocal %35 {approx = true} : vector<16x1xf32> -> vector<16x1xf32>
    %37 = vector.broadcast %36 : vector<16x1xf32> to vector<16x8xf32>
    %38 = arith.mulf %33, %37 : vector<16x8xf32>
    %cst_18 = arith.constant dense<0.000000e+00> : vector<16x16xf32>
    %39 = tpu.matmul %38, %22, %cst_18 {dimension_numbers = #tpu.dot_dimension_numbers<[1], [0], [0], [1], [0, 0, 1, 1], [], []>} : vector<16x8xf32>, vector<8x16xf32>, vector<16x16xf32> -> vector<16x16xf32>
    %c0_19 = arith.constant 0 : index
    %c0_20 = arith.constant 0 : index
    %40 = vector.load %arg7[%c0_19, %c0_20] : memref<16x32xf32, #tpu.memory_space<vmem>>, vector<16x32xf32>
    %cst_21 = arith.constant dense<0.000000e+00> : vector<16x32xf32>
    %41 = tpu.matmul %39, %40, %cst_21 {dimension_numbers = #tpu.dot_dimension_numbers<[1], [0], [0], [1], [0, 0, 1, 1], [], []>} : vector<16x16xf32>, vector<16x32xf32>, vector<16x32xf32> -> vector<16x32xf32>
    %c0_22 = arith.constant 0 : index
    %c0_23 = arith.constant 0 : index
    %42 = vector.load %arg8[%c0_22, %c0_23] : memref<1x32xf32, #tpu.memory_space<vmem>>, vector<1x32xf32>
    %43 = vector.broadcast %42 : vector<1x32xf32> to vector<16x32xf32>
    %44 = arith.addf %41, %43 : vector<16x32xf32>
    %45 = arith.addf %44, %1 : vector<16x32xf32>
    %c0_24 = arith.constant 0 : index
    %c0_25 = arith.constant 0 : index
    %c0_26 = arith.constant 0 : index
    %46 = vector.load %arg9[%c0_24, %c0_25, %c0_26] : memref<1x16x32xf32, #tpu.memory_space<vmem>>, vector<1x16x32xf32>
    %47 = vector.shape_cast %46 : vector<1x16x32xf32> to vector<16x32xf32>
    %48 = vector.shape_cast %45 : vector<16x32xf32> to vector<1x16x32xf32>
    tpu.vector_store %arg9[%c0_24, %c0_25, %c0_26], %48 {strides = array<i32>} : memref<1x16x32xf32, #tpu.memory_space<vmem>>, vector<1x16x32xf32>,
    return
  }
  func.func @transform_0(%arg0: i32) -> (i32, i32, i32) {
    %c0_i32 = arith.constant 0 : i32
    %c0_i32_0 = arith.constant 0 : i32
    %c0_i32_1 = arith.constant 0 : i32
    return %arg0, %c0_i32, %c0_i32_0 : i32, i32, i32
  }
  func.func @transform_1(%arg0: i32) -> (i32, i32, i32) {
    %c0_i32 = arith.constant 0 : i32
    %c0_i32_0 = arith.constant 0 : i32
    %c0_i32_1 = arith.constant 0 : i32
    return %arg0, %c0_i32, %c0_i32_0 : i32, i32, i32
  }
  func.func @transform_2(%arg0: i32) -> (i32, i32) {
    %c0_i32 = arith.constant 0 : i32
    %c0_i32_0 = arith.constant 0 : i32
    %c0_i32_1 = arith.constant 0 : i32
    return %c0_i32, %c0_i32_0 : i32, i32
  }
  func.func @transform_3(%arg0: i32) -> (i32, i32) {
    %c0_i32 = arith.constant 0 : i32
    %c0_i32_0 = arith.constant 0 : i32
    %c0_i32_1 = arith.constant 0 : i32
    return %c0_i32, %c0_i32_0 : i32, i32
  }
  func.func @transform_4(%arg0: i32) -> (i32, i32) {
    %c0_i32 = arith.constant 0 : i32
    %c0_i32_0 = arith.constant 0 : i32
    %c0_i32_1 = arith.constant 0 : i32
    return %c0_i32, %c0_i32_0 : i32, i32
  }
  func.func @transform_5(%arg0: i32) -> (i32, i32) {
    %c0_i32 = arith.constant 0 : i32
    %c0_i32_0 = arith.constant 0 : i32
    %c0_i32_1 = arith.constant 0 : i32
    return %c0_i32, %c0_i32_0 : i32, i32
  }
  func.func @transform_6(%arg0: i32) -> (i32, i32) {
    %c0_i32 = arith.constant 0 : i32
    %c0_i32_0 = arith.constant 0 : i32
    %c0_i32_1 = arith.constant 0 : i32
    return %c0_i32, %c0_i32_0 : i32, i32
  }
  func.func @transform_7(%arg0: i32) -> (i32, i32) {
    %c0_i32 = arith.constant 0 : i32
    %c0_i32_0 = arith.constant 0 : i32
    %c0_i32_1 = arith.constant 0 : i32
    return %c0_i32, %c0_i32_0 : i32, i32
  }
  func.func @transform_8(%arg0: i32) -> (i32, i32, i32) {
    %c0_i32 = arith.constant 0 : i32
    %c0_i32_0 = arith.constant 0 : i32
    %c0_i32_1 = arith.constant 0 : i32
    return %arg0, %c0_i32, %c0_i32_0 : i32, i32, i32
  }
}

</mosaic_0001>

<llo_original>
// kernel: tpu_custom_call.1
$region0: #{tpu_custom_call.1}
  #allocation0 [shape = 'u32[]', space=smem, size = 0x4, offset = 0x4, fixed_abs, tag = 'smem constant byte address 0x4 - core index']
  #allocation1 [shape = 'u32[144,128]{1,0:T(1,128)}', space=vmem, size = 0x12000, scoped, tag = 'internal scratch']
  %s0 = inlined_call_operand.vmem [shape: f32[2,16,32], index: 0, kind: input, shape index: {}]
  %s1 = inlined_call_operand.hbm [shape: f32[2,32,32], index: 1, kind: input, shape index: {}]
  %s2 = inlined_call_operand.vmem [shape: f32[32,16], index: 2, kind: input, shape index: {}]
  %s3 = inlined_call_operand.vmem [shape: f32[1,16], index: 3, kind: input, shape index: {}]
  %s4 = inlined_call_operand.hbm [shape: f32[32,32], index: 4, kind: input, shape index: {}]
  %s5 = inlined_call_operand.vmem [shape: f32[1,32], index: 5, kind: input, shape index: {}]
  %s6 = inlined_call_operand.vmem [shape: f32[16,32], index: 6, kind: input, shape index: {}]
  %s7 = inlined_call_operand.vmem [shape: f32[1,32], index: 7, kind: input, shape index: {}]
  %s8 = inlined_call_operand.hbm [shape: f32[2,16,32], index: 8, kind: output, shape index: {}]
  %s9 = sld [smem:[#allocation0]]
  $region73: #{tpu_custom_call.1} parent=0
    _
  %s11 = ssub.s32 1, %s9
  %s12 = scalar_select 0, %s11, %s9
  $region1: #{tpu_custom_call.1} parent=0
    #allocation2 [shape = 'u8[32768]{0}', space=vmem, size = 0x8000, scoped, tag = 'input window, operand 1']
    #allocation3 [shape = 's32[2]{0}', space=sflag, size = 0x8, scoped, tag = 'scoped memory for tpu_custom_call.1']
    #allocation4 [shape = 's32[2]{0}', space=sflag, size = 0x8, scoped, tag = 'scoped memory for tpu_custom_call.1']
    #allocation5 [shape = 'u8[16384]{0}', space=vmem, size = 0x4000, scoped, tag = 'input window, operand 4, single buffered']
    #allocation6 [shape = 's32[1]{0}', space=sflag, size = 0x4, scoped, tag = 'scoped memory for tpu_custom_call.1']
    #allocation7 [shape = 'u8[16384]{0}', space=vmem, size = 0x4000, scoped, tag = 'output window, operand 0']
    %13 = vsyncpa [#allocation3], 0
    %s14 = scalar_lea.sflag [#allocation3], 1
    %15 = vsyncpa %s14, 0
    %16 = vsyncpa [#allocation6], 0
    %17 = vsyncpa [#allocation4], 0
    %s18 = scalar_lea.sflag [#allocation4], 1
    %19 = vsyncpa %s18, 0
    loop: start=0, step=1, limit=4
    $region2: #{tpu_custom_call.1} parent=1 // loop_pre_header
      _
    $region3: #{tpu_custom_call.1} parent=1 // loop_header
      %s21 = sphi 0, %s25
      %p22 = scmp.ge.s32.totalorder %s21, 4
      %s31 = sphi 0, %s33
      %s34 = sphi 0, %s31
      %s35 = sphi 0, %s34
      %s51 = sphi 0, %s35
      %s57 = sphi 0, %s59
      %s60 = sphi 0, %s57
      %s61 = sphi 0, %s60
      %s77 = sphi 0, %s61
      %s81 = sphi 0, %s81
      %s83 = sphi 0, %s81
      %s84 = sphi 0, %s83
      %s98 = sphi 0, %s84
      %s102 = sphi 0, %s102
      %s104 = sphi 0, %s102
      %s105 = sphi 0, %s104
      %s119 = sphi 0, %s105
      %s123 = sphi 0, %s123
      %s125 = sphi 0, %s123
      %s126 = sphi 0, %s125
      %s140 = sphi 0, %s126
      %s144 = sphi 0, %s144
      %s146 = sphi 0, %s144
      %s147 = sphi 0, %s146
      %s161 = sphi 0, %s147
      %s165 = sphi 0, %s165
      %s167 = sphi 0, %s165
      %s168 = sphi 0, %s167
      %s182 = sphi 0, %s168
      %s186 = sphi 0, %s186
      %s188 = sphi 0, %s186
      %s189 = sphi 0, %s188
      %s203 = sphi 0, %s189
      %s209 = sphi 0, %s211
      %s212 = sphi 0, %s209
      %s213 = sphi 0, %s212
      %s229 = sphi 0, %s213
    $region4: #{tpu_custom_call.1} parent=1 // loop_header_branch
      %24 = sbr.rel (%p22) target = $region8
    $region5: #{tpu_custom_call.1} parent=1 // loop_body
      %s26 = ssub.s32 %s21, 1
      %s27 = ssub.s32 %s21, 2
      %s28 = sadd.s32 %s21, 1
      %s29 = ssub.s32 %s21, %s28
      %p30 = scmp.eq.s32.totalorder %s29, 0
      %s32 = sadd.s32 %s31, 1
      %s33 = scalar_select %p30, %s31, %s32
      %p36 = pneg %p30
      %p37 = scmp.eq.s32.totalorder %s21, 1
      %p38 = por %p36, %p37
      %p39 = scmp.ne.s32.totalorder %s31, %s34
      %p40 = scmp.eq.s32.totalorder %s21, 0
      %p41 = por %p39, %p40
      %p42 = scmp.ne.s32.totalorder %s31, %s34
      %p43 = scmp.eq.s32.totalorder %s26, 1
      %p44 = por %p42, %p43
      %p45 = scmp.ne.s32.totalorder %s34, %s35
      %p46 = scmp.eq.s32.totalorder %s26, 0
      %p47 = por %p45, %p46
      %p48 = scmp.ne.s32.totalorder %s34, %s35
      %p49 = scmp.eq.s32.totalorder %s27, 1
      %p50 = por %p48, %p49
      %p52 = scmp.ne.s32.totalorder %s35, %s51
      %p53 = scmp.eq.s32.totalorder %s27, 0
      %p54 = por %p52, %p53
      %s55 = ssub.s32 %s21, %s28
      %p56 = scmp.eq.s32.totalorder %s55, 0
      %s58 = sadd.s32 %s57, 1
      %s59 = scalar_select %p56, %s57, %s58
      %p62 = pneg %p56
      %p63 = scmp.eq.s32.totalorder %s21, 1
      %p64 = por %p62, %p63
      %p65 = scmp.ne.s32.totalorder %s57, %s60
      %p66 = scmp.eq.s32.totalorder %s21, 0
      %p67 = por %p65, %p66
      %p68 = scmp.ne.s32.totalorder %s57, %s60
      %p69 = scmp.eq.s32.totalorder %s26, 1
      %p70 = por %p68, %p69
      %p71 = scmp.ne.s32.totalorder %s60, %s61
      %p72 = scmp.eq.s32.totalorder %s26, 0
      %p73 = por %p71, %p72
      %p74 = scmp.ne.s32.totalorder %s60, %s61
      %p75 = scmp.eq.s32.totalorder %s27, 1
      %p76 = por %p74, %p75
      %p78 = scmp.ne.s32.totalorder %s61, %s77
      %p79 = scmp.eq.s32.totalorder %s27, 0
      %p80 = por %p78, %p79
      %s82 = sadd.s32 %s81, 1
      %p85 = scmp.eq.s32.totalorder %s21, 1
      %p86 = scmp.ne.s32.totalorder %s81, %s83
      %p87 = scmp.eq.s32.totalorder %s21, 0
      %p88 = por %p86, %p87
      %p89 = scmp.ne.s32.totalorder %s81, %s83
      %p90 = scmp.eq.s32.totalorder %s26, 1
      %p91 = por %p89, %p90
      %p92 = scmp.ne.s32.totalorder %s83, %s84
      %p93 = scmp.eq.s32.totalorder %s26, 0
      %p94 = por %p92, %p93
      %p95 = scmp.ne.s32.totalorder %s83, %s84
      %p96 = scmp.eq.s32.totalorder %s27, 1
      %p97 = por %p95, %p96
      %p99 = scmp.ne.s32.totalorder %s84, %s98
      %p100 = scmp.eq.s32.totalorder %s27, 0
      %p101 = por %p99, %p100
      %s103 = sadd.s32 %s102, 1
      %p106 = scmp.eq.s32.totalorder %s21, 1
      %p107 = scmp.ne.s32.totalorder %s102, %s104
      %p108 = scmp.eq.s32.totalorder %s21, 0
      %p109 = por %p107, %p108
      %p110 = scmp.ne.s32.totalorder %s102, %s104
      %p111 = scmp.eq.s32.totalorder %s26, 1
      %p112 = por %p110, %p111
      %p113 = scmp.ne.s32.totalorder %s104, %s105
      %p114 = scmp.eq.s32.totalorder %s26, 0
      %p115 = por %p113, %p114
      %p116 = scmp.ne.s32.totalorder %s104, %s105
      %p117 = scmp.eq.s32.totalorder %s27, 1
      %p118 = por %p116, %p117
      %p120 = scmp.ne.s32.totalorder %s105, %s119
      %p121 = scmp.eq.s32.totalorder %s27, 0
      %p122 = por %p120, %p121
      %s124 = sadd.s32 %s123, 1
      %p127 = scmp.eq.s32.totalorder %s21, 1
      %p128 = scmp.ne.s32.totalorder %s123, %s125
      %p129 = scmp.eq.s32.totalorder %s21, 0
      %p130 = por %p128, %p129
      %p131 = scmp.ne.s32.totalorder %s123, %s125
      %p132 = scmp.eq.s32.totalorder %s26, 1
      %p133 = por %p131, %p132
      %p134 = scmp.ne.s32.totalorder %s125, %s126
      %p135 = scmp.eq.s32.totalorder %s26, 0
      %p136 = por %p134, %p135
      %p137 = scmp.ne.s32.totalorder %s125, %s126
      %p138 = scmp.eq.s32.totalorder %s27, 1
      %p139 = por %p137, %p138
      %p141 = scmp.ne.s32.totalorder %s126, %s140
      %p142 = scmp.eq.s32.totalorder %s27, 0
      %p143 = por %p141, %p142
      %s145 = sadd.s32 %s144, 1
      %p148 = scmp.eq.s32.totalorder %s21, 1
      %p149 = scmp.ne.s32.totalorder %s144, %s146
      %p150 = scmp.eq.s32.totalorder %s21, 0
      %p151 = por %p149, %p150
      %p152 = scmp.ne.s32.totalorder %s144, %s146
      %p153 = scmp.eq.s32.totalorder %s26, 1
      %p154 = por %p152, %p153
      %p155 = scmp.ne.s32.totalorder %s146, %s147
      %p156 = scmp.eq.s32.totalorder %s26, 0
      %p157 = por %p155, %p156
      %p158 = scmp.ne.s32.totalorder %s146, %s147
      %p159 = scmp.eq.s32.totalorder %s27, 1
      %p160 = por %p158, %p159
      %p162 = scmp.ne.s32.totalorder %s147, %s161
      %p163 = scmp.eq.s32.totalorder %s27, 0
      %p164 = por %p162, %p163
      %s166 = sadd.s32 %s165, 1
      %p169 = scmp.eq.s32.totalorder %s21, 1
      %p170 = scmp.ne.s32.totalorder %s165, %s167
      %p171 = scmp.eq.s32.totalorder %s21, 0
      %p172 = por %p170, %p171
      %p173 = scmp.ne.s32.totalorder %s165, %s167
      %p174 = scmp.eq.s32.totalorder %s26, 1
      %p175 = por %p173, %p174
      %p176 = scmp.ne.s32.totalorder %s167, %s168
      %p177 = scmp.eq.s32.totalorder %s26, 0
      %p178 = por %p176, %p177
      %p179 = scmp.ne.s32.totalorder %s167, %s168
      %p180 = scmp.eq.s32.totalorder %s27, 1
      %p181 = por %p179, %p180
      %p183 = scmp.ne.s32.totalorder %s168, %s182
      %p184 = scmp.eq.s32.totalorder %s27, 0
      %p185 = por %p183, %p184
      %s187 = sadd.s32 %s186, 1
      %p190 = scmp.eq.s32.totalorder %s21, 1
      %p191 = scmp.ne.s32.totalorder %s186, %s188
      %p192 = scmp.eq.s32.totalorder %s21, 0
      %p193 = por %p191, %p192
      %p194 = scmp.ne.s32.totalorder %s186, %s188
      %p195 = scmp.eq.s32.totalorder %s26, 1
      %p196 = por %p194, %p195
      %p197 = scmp.ne.s32.totalorder %s188, %s189
      %p198 = scmp.eq.s32.totalorder %s26, 0
      %p199 = por %p197, %p198
      %p200 = scmp.ne.s32.totalorder %s188, %s189
      %p201 = scmp.eq.s32.totalorder %s27, 1
      %p202 = por %p200, %p201
      %p204 = scmp.ne.s32.totalorder %s189, %s203
      %p205 = scmp.eq.s32.totalorder %s27, 0
      %p206 = por %p204, %p205
      %s207 = ssub.s32 %s21, %s28
      %p208 = scmp.eq.s32.totalorder %s207, 0
      %s210 = sadd.s32 %s209, 1
      %s211 = scalar_select %p208, %s209, %s210
      %p214 = pneg %p208
      %p215 = scmp.eq.s32.totalorder %s21, 1
      %p216 = por %p214, %p215
      %p217 = scmp.ne.s32.totalorder %s209, %s212
      %p218 = scmp.eq.s32.totalorder %s21, 0
      %p219 = por %p217, %p218
      %p220 = scmp.ne.s32.totalorder %s209, %s212
      %p221 = scmp.eq.s32.totalorder %s26, 1
      %p222 = por %p220, %p221
      %p223 = scmp.ne.s32.totalorder %s212, %s213
      %p224 = scmp.eq.s32.totalorder %s26, 0
      %p225 = por %p223, %p224
      %p226 = scmp.ne.s32.totalorder %s212, %s213
      %p227 = scmp.eq.s32.totalorder %s27, 1
      %p228 = por %p226, %p227
      %p230 = scmp.ne.s32.totalorder %s213, %s229
      %p231 = scmp.eq.s32.totalorder %s27, 0
      %p232 = por %p230, %p231
      %p233 = scmp.le.s32.totalorder 1, %s21
      %p234 = scmp.lt.s32.totalorder %s21, 3
      %p235 = pnand %p233, %p234
      %p236 = pneg %p235
      // Predicated region
      $region9: #{tpu_custom_call.1} parent=5 // pred_check
        _
      $region10: #{tpu_custom_call.1} parent=5 // pred_check_branch
        %238 = sbr.rel (%p235) target = $region12
      $region11: #{tpu_custom_call.1} parent=5 // pred_region
        %s239 = ssub.s32 %s21, 1
        // Predicated region
        $region13: #{tpu_custom_call.1} parent=11 // pred_check
          %p240 = pneg %p94
        $region14: #{tpu_custom_call.1} parent=11 // pred_check_branch
          %242 = sbr.rel (%p240) target = $region16
        $region15: #{tpu_custom_call.1} parent=11 // pred_region
          _
        $region16: #{tpu_custom_call.1} parent=11 // pred_fallthru
          _
        // Predicated region
        $region17: #{tpu_custom_call.1} parent=11 // pred_check
          %p243 = pneg %p115
        $region18: #{tpu_custom_call.1} parent=11 // pred_check_branch
          %245 = sbr.rel (%p243) target = $region20
        $region19: #{tpu_custom_call.1} parent=11 // pred_region
          _
        $region20: #{tpu_custom_call.1} parent=11 // pred_fallthru
          _
        // Predicated region
        $region21: #{tpu_custom_call.1} parent=11 // pred_check
          %p246 = pneg %p136
        $region22: #{tpu_custom_call.1} parent=11 // pred_check_branch
          %248 = sbr.rel (%p246) target = $region24
        $region23: #{tpu_custom_call.1} parent=11 // pred_region
          %s250 = ssub.s32 512, 512
          %251 = vsyncadd [#allocation6], %s250
          %s252 = sshll.u32 [#allocation5], 4
          %s253 = int_to_ptr.vmem [resolvable:$true] %s252
          %258 = dma.hbm_to_vmem [thread:$0]  %s4, 512, %s253, [#allocation6], 128, 128, 8
        $region24: #{tpu_custom_call.1} parent=11 // pred_fallthru
          _
        // Predicated region
        $region25: #{tpu_custom_call.1} parent=11 // pred_check
          %p259 = pneg %p157
        $region26: #{tpu_custom_call.1} parent=11 // pred_check_branch
          %261 = sbr.rel (%p259) target = $region28
        $region27: #{tpu_custom_call.1} parent=11 // pred_region
          _
        $region28: #{tpu_custom_call.1} parent=11 // pred_fallthru
          _
        // Predicated region
        $region29: #{tpu_custom_call.1} parent=11 // pred_check
          %p262 = pneg %p178
        $region30: #{tpu_custom_call.1} parent=11 // pred_check_branch
          %264 = sbr.rel (%p262) target = $region32
        $region31: #{tpu_custom_call.1} parent=11 // pred_region
          _
        $region32: #{tpu_custom_call.1} parent=11 // pred_fallthru
          _
        // Predicated region
        $region33: #{tpu_custom_call.1} parent=11 // pred_check
          %p265 = pneg %p199
        $region34: #{tpu_custom_call.1} parent=11 // pred_check_branch
          %267 = sbr.rel (%p265) target = $region36
        $region35: #{tpu_custom_call.1} parent=11 // pred_region
          _
        $region36: #{tpu_custom_call.1} parent=11 // pred_fallthru
          _
      $region12: #{tpu_custom_call.1} parent=5 // pred_fallthru
        _
      %p268 = scmp.lt.s32.totalorder %s21, 2
      // Predicated region
      $region37: #{tpu_custom_call.1} parent=5 // pred_check
        %p269 = pneg %p268
      $region38: #{tpu_custom_call.1} parent=5 // pred_check_branch
        %271 = sbr.rel (%p269) target = $region40
      $region39: #{tpu_custom_call.1} parent=5 // pred_region
        // Predicated region
        $region41: #{tpu_custom_call.1} parent=39 // pred_check
          %p272 = pneg %p41
        $region42: #{tpu_custom_call.1} parent=39 // pred_check_branch
          %274 = sbr.rel (%p272) target = $region44
        $region43: #{tpu_custom_call.1} parent=39 // pred_region
          %p275 = scmp.lt.s32.totalorder %s21, 1
          %s276 = scalar_select %p275, %s21, 1
          %s277 = smul.addr %s276, 2
          %s278 = smul.addr %s277, 8
          %s279 = scalar_lea.vmem %s0, %s278
        $region44: #{tpu_custom_call.1} parent=39 // pred_fallthru
          _
        // Predicated region
        $region45: #{tpu_custom_call.1} parent=39 // pred_check
          %p280 = pneg %p67
        $region46: #{tpu_custom_call.1} parent=39 // pred_check_branch
          %282 = sbr.rel (%p280) target = $region48
        $region47: #{tpu_custom_call.1} parent=39 // pred_region
          %s283 = sand.u32 %s57, 1
          %s284 = scalar_lea.sflag [#allocation3], %s283
          %s285 = sand.u32 %s57, 1
          %s286 = smul.addr %s285, 32
          %s287 = scalar_lea.vmem [#allocation2], %s286
          %s289 = ssub.s32 512, 512
          %290 = vsyncadd %s284, %s289
          %s291 = smul.addr %s21, 4
          %s292 = smul.addr %s291, 128
          %s293 = scalar_lea.hbm %s1, %s292
          %s294 = sshll.u32 %s287, 4
          %s295 = int_to_ptr.vmem [resolvable:$true] %s294
          %300 = dma.hbm_to_vmem [thread:$0]  %s293, 512, %s295, %s284, 128, 128, 8
        $region48: #{tpu_custom_call.1} parent=39 // pred_fallthru
          _
      $region40: #{tpu_custom_call.1} parent=5 // pred_fallthru
        _
      %p301 = scmp.le.s32.totalorder 1, %s21
      %p302 = scmp.lt.s32.totalorder %s21, 3
      %p303 = pnand %p301, %p302
      %p304 = pneg %p303
      // Predicated region
      $region49: #{tpu_custom_call.1} parent=5 // pred_check
        _
      $region50: #{tpu_custom_call.1} parent=5 // pred_check_branch
        %306 = sbr.rel (%p303) target = $region52
      $region51: #{tpu_custom_call.1} parent=5 // pred_region
        %s307 = ssub.s32 %s21, 1
        %s308 = sand.u32 %s60, 1
        %s309 = scalar_lea.sflag [#allocation3], %s308
        %s310 = sand.u32 %s60, 1
        %s311 = smul.addr %s310, 32
        %s312 = scalar_lea.vmem [#allocation2], %s311
        // Predicated region
        $region53: #{tpu_custom_call.1} parent=51 // pred_check
          %p313 = pneg %p73
        $region54: #{tpu_custom_call.1} parent=51 // pred_check_branch
          %315 = sbr.rel (%p313) target = $region56
        $region55: #{tpu_custom_call.1} parent=51 // pred_region
          %316 = dma.done %s309, 512
        $region56: #{tpu_custom_call.1} parent=51 // pred_fallthru
          _
        // Predicated region
        $region57: #{tpu_custom_call.1} parent=51 // pred_check
          %p317 = pneg %p136
        $region58: #{tpu_custom_call.1} parent=51 // pred_check_branch
          %319 = sbr.rel (%p317) target = $region60
        $region59: #{tpu_custom_call.1} parent=51 // pred_region
          %320 = dma.done [#allocation6], 512
        $region60: #{tpu_custom_call.1} parent=51 // pred_fallthru
          _
        %p321 = scmp.lt.s32.totalorder %s26, 1
        %s322 = scalar_select %p321, %s26, 1
        %s323 = smul.addr %s322, 2
        %s324 = smul.addr %s323, 8
        %s325 = scalar_lea.vmem %s0, %s324
        %p326 = pneg %p47
        %p327 = pneg %p44
        %s328 = sand.u32 %s60, 1
        %s329 = scalar_lea.sflag [#allocation3], %s328
        %s330 = sand.u32 %s60, 1
        %s331 = smul.addr %s330, 32
        %s332 = scalar_lea.vmem [#allocation2], %s331
        %p333 = pneg %p73
        %p334 = pneg %p70
        %p335 = pneg %p94
        %p336 = pneg %p91
        %p337 = pneg %p115
        %p338 = pneg %p112
        %p339 = pneg %p136
        %p340 = pneg %p133
        %p341 = pneg %p157
        %p342 = pneg %p154
        %p343 = pneg %p178
        %p344 = pneg %p175
        %p345 = pneg %p199
        %p346 = pneg %p196
        %p347 = pneg %p225
        %p348 = pneg %p222
        %s349 = sand.u32 %s212, 1
        %s350 = scalar_lea.sflag [#allocation4], %s349
        %s351 = sand.u32 %s212, 1
        %s352 = smul.addr %s351, 16
        %s353 = scalar_lea.vmem [#allocation7], %s352
        %p354 = scmp.lt.s32.totalorder %s26, 1
        %s355 = scalar_select %p354, %s26, 1
        %s356 = smul.addr %s355, 2
        %s357 = smul.addr %s356, 8
        %s358 = scalar_lea.vmem %s0, %s357
        %v359 = vld [vmem:[%s358] sm:$0xff]
        %v360 = vld [vmem:[%s358 + $0x8] sm:$0xff]
        %v361 = vld [vmem:[%s312] sm:$0xff]
        %v362 = vld [vmem:[%s312 + $0x8] sm:$0xff]
        %v363 = vld [vmem:[%s312 + $0x10] sm:$0xff]
        %v364 = vld [vmem:[%s312 + $0x18] sm:$0xff]
        %v365 = vld [vmem:[%s2] sm:$0xff]
        %v366 = vld [vmem:[%s2 + $0x8] sm:$0xff]
        %v367 = vld [vmem:[%s2 + $0x10] sm:$0xff]
        %v368 = vld [vmem:[%s2 + $0x18] sm:$0xff]
        %v369 = vld [vmem:[%s3] sm:$0x1]
        %v371 = vlaneseq
        %v372 = vshrl.u32 %v371, 7
        %v373 = vsub.s32 0, %v372
        %v374 = vrot.slane %v369, %v373
        %vm376 = vcmask 261120
        %v378 = vsel %vm376, %v359, 0
        %v381 = vsel %vm376, %v360, 0
        %383 = vmatprep.subr.mxu0 0.0
        %384 = vmatpush1.msra.mxu0 0.0
        %385 = vmatprep.subr.mxu0 0.0
        %386 = vmatpush1.msra.mxu0 0.0
        %387 = vmatprep.subr.mxu0 0.0
        %388 = vmatpush1.msra.mxu0 0.0
        %389 = vmatprep.subr.mxu0 0.0
        %390 = vmatpush1.msra.mxu0 0.0
        %391 = vmatprep.subr.mxu0 0.0
        %392 = vmatpush1.msra.mxu0 0.0
        %393 = vmatprep.subr.mxu0 0.0
        %394 = vmatpush1.msra.mxu0 0.0
        %395 = vmatprep.subr.mxu0 0.0
        %396 = vmatpush1.msra.mxu0 0.0
        %397 = vmatprep.subr.mxu0 0.0
        %398 = vmatpush1.msra.mxu0 0.0
        %399 = vmatprep.subr.mxu0 0.0
        %400 = vmatpush1.msra.mxu0 0.0
        %401 = vmatprep.subr.mxu0 0.0
        %402 = vmatpush1.msra.mxu0 0.0
        %403 = vmatprep.subr.mxu0 0.0
        %404 = vmatpush1.msra.mxu0 0.0
        %405 = vmatprep.subr.mxu0 0.0
        %406 = vmatpush1.msra.mxu0 0.0
        %407 = vmatprep.subr.mxu0 0.0
        %408 = vmatpush1.msra.mxu0 %v368
        %409 = vmatprep.subr.mxu0 0.0
        %410 = vmatpush1.msra.mxu0 %v367
        %411 = vmatprep.subr.mxu0 0.0
        %412 = vmatpush1.msra.mxu0 %v366
        %413 = vmatprep.subr.mxu0 0.0
        %414 = vmatpush1.msra.mxu0 %v365
        %415 = vmatprep.subr.mxu0 0.0
        %416 = vmatpush2.msra.mxu0 0.0
        %417 = vmatprep.subr.mxu0 0.0
        %418 = vmatpush2.msra.mxu0 0.0
        %419 = vmatprep.subr.mxu0 0.0
        %420 = vmatpush2.msra.mxu0 0.0
        %421 = vmatprep.subr.mxu0 0.0
        %422 = vmatpush2.msra.mxu0 0.0
        %423 = vmatprep.subr.mxu0 0.0
        %424 = vmatpush2.msra.mxu0 0.0
        %425 = vmatprep.subr.mxu0 0.0
        %426 = vmatpush2.msra.mxu0 0.0
        %427 = vmatprep.subr.mxu0 0.0
        %428 = vmatpush2.msra.mxu0 0.0
        %429 = vmatprep.subr.mxu0 0.0
        %430 = vmatpush2.msra.mxu0 0.0
        %431 = vmatprep.subr.mxu0 0.0
        %432 = vmatpush2.msra.mxu0 0.0
        %433 = vmatprep.subr.mxu0 0.0
        %434 = vmatpush2.msra.mxu0 0.0
        %435 = vmatprep.subr.mxu0 0.0
        %436 = vmatpush2.msra.mxu0 0.0
        %437 = vmatprep.subr.mxu0 0.0
        %438 = vmatpush2.msra.mxu0 0.0
        %439 = vmatprep.subr.mxu0 0.0
        %440 = vmatpush2.msra.mxu0 0.0
        %441 = vmatprep.subr.mxu0 0.0
        %442 = vmatpush2.msra.mxu0 0.0
        %443 = vmatprep.subr.mxu0 0.0
        %444 = vmatpush2.msra.mxu0 0.0
        %445 = vmatprep.subr.mxu0 0.0
        %446 = vmatpush2.msra.mxu0 0.0
        %447 = vmatprep.mubr.f32.mxu0 0.0
        %448 = vmatmul.mubr.f32.gmra.mxu0 %v378
        %v449 = vpop.f32.mrf.mxu0
        %v450 = vadd.f32 %v374, %v449
        %v451 = vpop.f32.mrf.mxu0
        %452 = vmatprep.mubr.f32.mxu0 0.0
        %453 = vmatmul.mubr.f32.gmra.mxu0 %v381
        %v454 = vpop.f32.mrf.mxu0
        %v455 = vadd.f32 %v374, %v454
        %v456 = vpop.f32.mrf.mxu0
        %457 = vdwg.mxu0
        %v458 = vld [vmem:[#allocation5] sm:$0xff]
        %v459 = vld [vmem:[#allocation5 + $0x8] sm:$0xff]
        %v460 = vld [vmem:[#allocation5 + $0x10] sm:$0xff]
        %v461 = vld [vmem:[#allocation5 + $0x18] sm:$0xff]
        %v462 = vld [vmem:[%s5] sm:$0x1]
        %v464 = vlaneseq
        %v465 = vshrl.u32 %v464, 7
        %v466 = vsub.s32 0, %v465
        %v467 = vrot.slane %v462, %v466
        %v470 = vsel %vm376, %v361, 0
        %v473 = vsel %vm376, %v362, 0
        %v476 = vsel %vm376, %v363, 0
        %v479 = vsel %vm376, %v364, 0
        %481 = vmatprep.subr.mxu0 0.0
        %482 = vmatpush1.msra.mxu0 0.0
        %483 = vmatprep.subr.mxu0 0.0
        %484 = vmatpush1.msra.mxu0 0.0
        %485 = vmatprep.subr.mxu0 0.0
        %486 = vmatpush1.msra.mxu0 0.0
        %487 = vmatprep.subr.mxu0 0.0
        %488 = vmatpush1.msra.mxu0 0.0
        %489 = vmatprep.subr.mxu0 0.0
        %490 = vmatpush1.msra.mxu0 0.0
        %491 = vmatprep.subr.mxu0 0.0
        %492 = vmatpush1.msra.mxu0 0.0
        %493 = vmatprep.subr.mxu0 0.0
        %494 = vmatpush1.msra.mxu0 0.0
        %495 = vmatprep.subr.mxu0 0.0
        %496 = vmatpush1.msra.mxu0 0.0
        %497 = vmatprep.subr.mxu0 0.0
        %498 = vmatpush1.msra.mxu0 0.0
        %499 = vmatprep.subr.mxu0 0.0
        %500 = vmatpush1.msra.mxu0 0.0
        %501 = vmatprep.subr.mxu0 0.0
        %502 = vmatpush1.msra.mxu0 0.0
        %503 = vmatprep.subr.mxu0 0.0
        %504 = vmatpush1.msra.mxu0 0.0
        %505 = vmatprep.subr.mxu0 0.0
        %506 = vmatpush1.msra.mxu0 %v461
        %507 = vmatprep.subr.mxu0 0.0
        %508 = vmatpush1.msra.mxu0 %v460
        %509 = vmatprep.subr.mxu0 0.0
        %510 = vmatpush1.msra.mxu0 %v459
        %511 = vmatprep.subr.mxu0 0.0
        %512 = vmatpush1.msra.mxu0 %v458
        %513 = vmatprep.subr.mxu0 0.0
        %514 = vmatpush2.msra.mxu0 0.0
        %515 = vmatprep.subr.mxu0 0.0
        %516 = vmatpush2.msra.mxu0 0.0
        %517 = vmatprep.subr.mxu0 0.0
        %518 = vmatpush2.msra.mxu0 0.0
        %519 = vmatprep.subr.mxu0 0.0
        %520 = vmatpush2.msra.mxu0 0.0
        %521 = vmatprep.subr.mxu0 0.0
        %522 = vmatpush2.msra.mxu0 0.0
        %523 = vmatprep.subr.mxu0 0.0
        %524 = vmatpush2.msra.mxu0 0.0
        %525 = vmatprep.subr.mxu0 0.0
        %526 = vmatpush2.msra.mxu0 0.0
        %527 = vmatprep.subr.mxu0 0.0
        %528 = vmatpush2.msra.mxu0 0.0
        %529 = vmatprep.subr.mxu0 0.0
        %530 = vmatpush2.msra.mxu0 0.0
        %531 = vmatprep.subr.mxu0 0.0
        %532 = vmatpush2.msra.mxu0 0.0
        %533 = vmatprep.subr.mxu0 0.0
        %534 = vmatpush2.msra.mxu0 0.0
        %535 = vmatprep.subr.mxu0 0.0
        %536 = vmatpush2.msra.mxu0 0.0
        %537 = vmatprep.subr.mxu0 0.0
        %538 = vmatpush2.msra.mxu0 0.0
        %539 = vmatprep.subr.mxu0 0.0
        %540 = vmatpush2.msra.mxu0 0.0
        %541 = vmatprep.subr.mxu0 0.0
        %542 = vmatpush2.msra.mxu0 0.0
        %543 = vmatprep.subr.mxu0 0.0
        %544 = vmatpush2.msra.mxu0 0.0
        %545 = vmatprep.mubr.f32.mxu0 0.0
        %546 = vmatmul.mubr.f32.gmra.mxu0 %v470
        %v547 = vpop.f32.mrf.mxu0
        %v548 = vadd.f32 %v467, %v547
        %v549 = vpop.f32.mrf.mxu0
        %550 = vmatprep.mubr.f32.mxu0 0.0
        %551 = vmatmul.mubr.f32.gmra.mxu0 %v473
        %v552 = vpop.f32.mrf.mxu0
        %v553 = vadd.f32 %v467, %v552
        %v554 = vpop.f32.mrf.mxu0
        %555 = vmatprep.mubr.f32.mxu0 0.0
        %556 = vmatmul.mubr.f32.gmra.mxu0 %v476
        %v557 = vpop.f32.mrf.mxu0
        %v558 = vadd.f32 %v467, %v557
        %v559 = vpop.f32.mrf.mxu0
        %560 = vmatprep.mubr.f32.mxu0 0.0
        %561 = vmatmul.mubr.f32.gmra.mxu0 %v479
        %v562 = vpop.f32.mrf.mxu0
        %v563 = vadd.f32 %v467, %v562
        %v564 = vpop.f32.mrf.mxu0
        %565 = vdwg.mxu0
        %v566 = vmax.f32 %v548, %v553
        %v567 = vmax.f32 %v566, %v558
        %v568 = vmax.f32 %v567, %v563
        %vm569 = vcmask 130048
        %v571 = vsel %vm569, %v450, 0
        %v574 = vsel %vm569, %v455, 0
        %v577 = vsel %vm569, %v568, 0
        %579 = vmatprep.subr.mxu0 0.0
        %580 = vmatpush1.xpose.msra.mxu0 0.0
        %581 = vmatprep.subr.mxu0 0.0
        %582 = vmatpush1.xpose.msra.mxu0 0.0
        %583 = vmatprep.subr.mxu0 0.0
        %584 = vmatpush1.xpose.msra.mxu0 0.0
        %585 = vmatprep.subr.mxu0 0.0
        %586 = vmatpush1.xpose.msra.mxu0 0.0
        %587 = vmatprep.subr.mxu0 0.0
        %588 = vmatpush1.xpose.msra.mxu0 0.0
        %589 = vmatprep.subr.mxu0 0.0
        %590 = vmatpush1.xpose.msra.mxu0 0.0
        %591 = vmatprep.subr.mxu0 0.0
        %592 = vmatpush1.xpose.msra.mxu0 0.0
        %593 = vmatprep.subr.mxu0 0.0
        %594 = vmatpush1.xpose.msra.mxu0 0.0
        %595 = vmatprep.subr.mxu0 0.0
        %596 = vmatpush1.xpose.msra.mxu0 0.0
        %597 = vmatprep.subr.mxu0 0.0
        %598 = vmatpush1.xpose.msra.mxu0 0.0
        %599 = vmatprep.subr.mxu0 0.0
        %600 = vmatpush1.xpose.msra.mxu0 0.0
        %601 = vmatprep.subr.mxu0 0.0
        %602 = vmatpush1.xpose.msra.mxu0 0.0
        %603 = vmatprep.subr.mxu0 0.0
        %604 = vmatpush1.xpose.msra.mxu0 0.0
        %605 = vmatprep.subr.mxu0 0.0
        %606 = vmatpush1.xpose.msra.mxu0 0.0
        %607 = vmatprep.subr.mxu0 0.0
        %608 = vmatpush1.xpose.msra.mxu0 0.0
        %609 = vmatprep.subr.mxu0 0.0
        %610 = vmatpush1.xpose.msra.mxu0 %v577
        %611 = vmatprep.subr.mxu0 0.0
        %612 = vmatpush2.xpose.msra.mxu0 0.0
        %613 = vmatprep.subr.mxu0 0.0
        %614 = vmatpush2.xpose.msra.mxu0 0.0
        %615 = vmatprep.subr.mxu0 0.0
        %616 = vmatpush2.xpose.msra.mxu0 0.0
        %617 = vmatprep.subr.mxu0 0.0
        %618 = vmatpush2.xpose.msra.mxu0 0.0
        %619 = vmatprep.subr.mxu0 0.0
        %620 = vmatpush2.xpose.msra.mxu0 0.0
        %621 = vmatprep.subr.mxu0 0.0
        %622 = vmatpush2.xpose.msra.mxu0 0.0
        %623 = vmatprep.subr.mxu0 0.0
        %624 = vmatpush2.xpose.msra.mxu0 0.0
        %625 = vmatprep.subr.mxu0 0.0
        %626 = vmatpush2.xpose.msra.mxu0 0.0
        %627 = vmatprep.subr.mxu0 0.0
        %628 = vmatpush2.xpose.msra.mxu0 0.0
        %629 = vmatprep.subr.mxu0 0.0
        %630 = vmatpush2.xpose.msra.mxu0 0.0
        %631 = vmatprep.subr.mxu0 0.0
        %632 = vmatpush2.xpose.msra.mxu0 0.0
        %633 = vmatprep.subr.mxu0 0.0
        %634 = vmatpush2.xpose.msra.mxu0 0.0
        %635 = vmatprep.subr.mxu0 0.0
        %636 = vmatpush2.xpose.msra.mxu0 0.0
        %637 = vmatprep.subr.mxu0 0.0
        %638 = vmatpush2.xpose.msra.mxu0 0.0
        %639 = vmatprep.subr.mxu0 0.0
        %640 = vmatpush2.xpose.msra.mxu0 0.0
        %641 = vmatprep.subr.mxu0 0.0
        %642 = vmatpush2.xpose.msra.mxu0 0.0
        %643 = vmatprep.mubr.f32.mxu0 0.0
        %644 = vmatmul.mubr.f32.gmra.mxu0 %v571
        %v645 = vpop.f32.mrf.mxu0
        %v646 = vadd.f32 0.0, %v645
        %v647 = vpop.f32.mrf.mxu0
        %648 = vmatprep.mubr.f32.mxu0 0.0
        %649 = vmatmul.mubr.f32.gmra.mxu0 %v574
        %v650 = vpop.f32.mrf.mxu0
        %v651 = vadd.f32 0.0, %v650
        %v652 = vpop.f32.mrf.mxu0
        %653 = vdwg.mxu0
        %v654 = vlaneseq
        %v655 = vand.u32 %v654, 127
        %vm656 = vcmp.lt.s32.totalorder %v655, 4
        %v657 = vsel %vm656, %v646, -1e+30
        %v658 = vsel %vm656, %v651, -1e+30
        %vm659 = vcmask 64512
        %v660 = vsel %vm659, %v657, -inf
        %661 = vmax.xlane.f32.xlu0 %v660
        %v662 = vpop.xlane.xlu0 %661
        %v663 = vsel %vm659, %v658, -inf
        %664 = vmax.xlane.f32.xlu0 %v663
        %v665 = vpop.xlane.xlu0 %664
        %v666 = vsub.f32 %v657, %v662
        %v667 = vsub.f32 %v658, %v665
        %v668 = vmul.f32 %v666, 1.442695
        %v669 = vpow.pop %v668
        %v670 = vmul.f32 %v667, 1.442695
        %v671 = vpow.pop %v670
        %v672 = vsel %vm659, %v669, 0.0
        %673 = vadd.xlane.f32.xlu0 %v672
        %v674 = vpop.xlane.xlu0 %673
        %v675 = vsel %vm659, %v671, 0.0
        %676 = vadd.xlane.f32.xlu0 %v675
        %v677 = vpop.xlane.xlu0 %676
        %v678 = vrcp.pop %v674
        %v679 = vrcp.pop %v677
        %v680 = vmul.f32 %v669, %v678
        %v681 = vmul.f32 %v671, %v679
        %682 = vrot.lane.b32.xlu0 %v568, 112
        %v683 = vpop.permute.xlu0 %682
        %v686 = vsel %vm659, %v680, 0
        %v689 = vsel %vm659, %v681, 0
        %691 = vmatprep.subr.mxu0 0.0
        %692 = vmatpush1.msra.mxu0 0.0
        %693 = vmatprep.subr.mxu0 0.0
        %694 = vmatpush1.msra.mxu0 0.0
        %695 = vmatprep.subr.mxu0 0.0
        %696 = vmatpush1.msra.mxu0 0.0
        %697 = vmatprep.subr.mxu0 0.0
        %698 = vmatpush1.msra.mxu0 0.0
        %699 = vmatprep.subr.mxu0 0.0
        %700 = vmatpush1.msra.mxu0 0.0
        %701 = vmatprep.subr.mxu0 0.0
        %702 = vmatpush1.msra.mxu0 0.0
        %703 = vmatprep.subr.mxu0 0.0
        %704 = vmatpush1.msra.mxu0 0.0
        %705 = vmatprep.subr.mxu0 0.0
        %706 = vmatpush1.msra.mxu0 0.0
        %707 = vmatprep.subr.mxu0 0.0
        %708 = vmatpush1.msra.mxu0 0.0
        %709 = vmatprep.subr.mxu0 0.0
        %710 = vmatpush1.msra.mxu0 0.0
        %711 = vmatprep.subr.mxu0 0.0
        %712 = vmatpush1.msra.mxu0 0.0
        %713 = vmatprep.subr.mxu0 0.0
        %714 = vmatpush1.msra.mxu0 0.0
        %715 = vmatprep.subr.mxu0 0.0
        %716 = vmatpush1.msra.mxu0 0.0
        %717 = vmatprep.subr.mxu0 0.0
        %718 = vmatpush1.msra.mxu0 0.0
        %719 = vmatprep.subr.mxu0 0.0
        %720 = vmatpush1.msra.mxu0 0.0
        %721 = vmatprep.subr.mxu0 0.0
        %722 = vmatpush1.msra.mxu0 %v683
        %723 = vmatprep.subr.mxu0 0.0
        %724 = vmatpush2.msra.mxu0 0.0
        %725 = vmatprep.subr.mxu0 0.0
        %726 = vmatpush2.msra.mxu0 0.0
        %727 = vmatprep.subr.mxu0 0.0
        %728 = vmatpush2.msra.mxu0 0.0
        %729 = vmatprep.subr.mxu0 0.0
        %730 = vmatpush2.msra.mxu0 0.0
        %731 = vmatprep.subr.mxu0 0.0
        %732 = vmatpush2.msra.mxu0 0.0
        %733 = vmatprep.subr.mxu0 0.0
        %734 = vmatpush2.msra.mxu0 0.0
        %735 = vmatprep.subr.mxu0 0.0
        %736 = vmatpush2.msra.mxu0 0.0
        %737 = vmatprep.subr.mxu0 0.0
        %738 = vmatpush2.msra.mxu0 0.0
        %739 = vmatprep.subr.mxu0 0.0
        %740 = vmatpush2.msra.mxu0 0.0
        %741 = vmatprep.subr.mxu0 0.0
        %742 = vmatpush2.msra.mxu0 0.0
        %743 = vmatprep.subr.mxu0 0.0
        %744 = vmatpush2.msra.mxu0 0.0
        %745 = vmatprep.subr.mxu0 0.0
        %746 = vmatpush2.msra.mxu0 0.0
        %747 = vmatprep.subr.mxu0 0.0
        %748 = vmatpush2.msra.mxu0 0.0
        %749 = vmatprep.subr.mxu0 0.0
        %750 = vmatpush2.msra.mxu0 0.0
        %751 = vmatprep.subr.mxu0 0.0
        %752 = vmatpush2.msra.mxu0 0.0
        %753 = vmatprep.subr.mxu0 0.0
        %754 = vmatpush2.msra.mxu0 0.0
        %755 = vmatprep.mubr.f32.mxu0 0.0
        %756 = vmatmul.mubr.f32.gmra.mxu0 %v686
        %v757 = vpop.f32.mrf.mxu0
        %v758 = vadd.f32 0.0, %v757
        %v759 = vpop.f32.mrf.mxu0
        %760 = vmatprep.mubr.f32.mxu0 0.0
        %761 = vmatmul.mubr.f32.gmra.mxu0 %v689
        %v762 = vpop.f32.mrf.mxu0
        %v763 = vadd.f32 0.0, %v762
        %v764 = vpop.f32.mrf.mxu0
        %765 = vdwg.mxu0
        %v766 = vld [vmem:[%s6] sm:$0xff]
        %v767 = vld [vmem:[%s6 + $0x8] sm:$0xff]
        %v768 = vld [vmem:[%s7] sm:$0x1]
        %v770 = vlaneseq
        %v771 = vshrl.u32 %v770, 7
        %v772 = vsub.s32 0, %v771
        %v773 = vrot.slane %v768, %v772
        %v776 = vsel %vm569, %v758, 0
        %v779 = vsel %vm569, %v763, 0
        %781 = vmatprep.subr.mxu0 0.0
        %782 = vmatpush1.msra.mxu0 0.0
        %783 = vmatprep.subr.mxu0 0.0
        %784 = vmatpush1.msra.mxu0 0.0
        %785 = vmatprep.subr.mxu0 0.0
        %786 = vmatpush1.msra.mxu0 0.0
        %787 = vmatprep.subr.mxu0 0.0
        %788 = vmatpush1.msra.mxu0 0.0
        %789 = vmatprep.subr.mxu0 0.0
        %790 = vmatpush1.msra.mxu0 0.0
        %791 = vmatprep.subr.mxu0 0.0
        %792 = vmatpush1.msra.mxu0 0.0
        %793 = vmatprep.subr.mxu0 0.0
        %794 = vmatpush1.msra.mxu0 0.0
        %795 = vmatprep.subr.mxu0 0.0
        %796 = vmatpush1.msra.mxu0 0.0
        %797 = vmatprep.subr.mxu0 0.0
        %798 = vmatpush1.msra.mxu0 0.0
        %799 = vmatprep.subr.mxu0 0.0
        %800 = vmatpush1.msra.mxu0 0.0
        %801 = vmatprep.subr.mxu0 0.0
        %802 = vmatpush1.msra.mxu0 0.0
        %803 = vmatprep.subr.mxu0 0.0
        %804 = vmatpush1.msra.mxu0 0.0
        %805 = vmatprep.subr.mxu0 0.0
        %806 = vmatpush1.msra.mxu0 0.0
        %807 = vmatprep.subr.mxu0 0.0
        %808 = vmatpush1.msra.mxu0 0.0
        %809 = vmatprep.subr.mxu0 0.0
        %810 = vmatpush1.msra.mxu0 %v767
        %811 = vmatprep.subr.mxu0 0.0
        %812 = vmatpush1.msra.mxu0 %v766
        %813 = vmatprep.subr.mxu0 0.0
        %814 = vmatpush2.msra.mxu0 0.0
        %815 = vmatprep.subr.mxu0 0.0
        %816 = vmatpush2.msra.mxu0 0.0
        %817 = vmatprep.subr.mxu0 0.0
        %818 = vmatpush2.msra.mxu0 0.0
        %819 = vmatprep.subr.mxu0 0.0
        %820 = vmatpush2.msra.mxu0 0.0
        %821 = vmatprep.subr.mxu0 0.0
        %822 = vmatpush2.msra.mxu0 0.0
        %823 = vmatprep.subr.mxu0 0.0
        %824 = vmatpush2.msra.mxu0 0.0
        %825 = vmatprep.subr.mxu0 0.0
        %826 = vmatpush2.msra.mxu0 0.0
        %827 = vmatprep.subr.mxu0 0.0
        %828 = vmatpush2.msra.mxu0 0.0
        %829 = vmatprep.subr.mxu0 0.0
        %830 = vmatpush2.msra.mxu0 0.0
        %831 = vmatprep.subr.mxu0 0.0
        %832 = vmatpush2.msra.mxu0 0.0
        %833 = vmatprep.subr.mxu0 0.0
        %834 = vmatpush2.msra.mxu0 0.0
        %835 = vmatprep.subr.mxu0 0.0
        %836 = vmatpush2.msra.mxu0 0.0
        %837 = vmatprep.subr.mxu0 0.0
        %838 = vmatpush2.msra.mxu0 0.0
        %839 = vmatprep.subr.mxu0 0.0
        %840 = vmatpush2.msra.mxu0 0.0
        %841 = vmatprep.subr.mxu0 0.0
        %842 = vmatpush2.msra.mxu0 0.0
        %843 = vmatprep.subr.mxu0 0.0
        %844 = vmatpush2.msra.mxu0 0.0
        %845 = vmatprep.mubr.f32.mxu0 0.0
        %846 = vmatmul.mubr.f32.gmra.mxu0 %v776
        %v847 = vpop.f32.mrf.mxu0
        %v848 = vadd.f32 %v773, %v847
        %v849 = vpop.f32.mrf.mxu0
        %850 = vmatprep.mubr.f32.mxu0 0.0
        %851 = vmatmul.mubr.f32.gmra.mxu0 %v779
        %v852 = vpop.f32.mrf.mxu0
        %v853 = vadd.f32 %v773, %v852
        %v854 = vpop.f32.mrf.mxu0
        %855 = vdwg.mxu0
        %v856 = vadd.f32 %v848, %v359
        %v857 = vadd.f32 %v853, %v360
        %858 = vst.msk [vmem:[%s353] sm:$0xff] %vm376, %v856
        %859 = vst.msk [vmem:[%s353 + $0x8] sm:$0xff] %vm376, %v857
        %s860 = sand.u32 %s212, 1
        %s861 = scalar_lea.sflag [#allocation4], %s860
        %s862 = sand.u32 %s212, 1
        %s863 = smul.addr %s862, 16
        %s864 = scalar_lea.vmem [#allocation7], %s863
        // Predicated region
        $region61: #{tpu_custom_call.1} parent=51 // pred_check
          %p865 = pneg %p222
        $region62: #{tpu_custom_call.1} parent=51 // pred_check_branch
          %867 = sbr.rel (%p865) target = $region64
        $region63: #{tpu_custom_call.1} parent=51 // pred_region
          %s869 = ssub.s32 256, 256
          %870 = vsyncadd %s861, %s869
          %s871 = smul.addr %s26, 2
          %s872 = smul.addr %s871, 128
          %s873 = scalar_lea.hbm %s8, %s872
          %s874 = sshll.u32 %s864, 4
          %s875 = int_to_ptr.vmem [resolvable:$true] %s874
          %880 = dma.vmem_to_hbm [thread:$0]  %s875, 256, %s873, %s861, 128, 128, 8
        $region64: #{tpu_custom_call.1} parent=51 // pred_fallthru
          _
      $region52: #{tpu_custom_call.1} parent=5 // pred_fallthru
        _
      %p881 = scmp.le.s32.totalorder 2, %s21
      // Predicated region
      $region65: #{tpu_custom_call.1} parent=5 // pred_check
        %p882 = pneg %p881
      $region66: #{tpu_custom_call.1} parent=5 // pred_check_branch
        %884 = sbr.rel (%p882) target = $region68
      $region67: #{tpu_custom_call.1} parent=5 // pred_region
        %s885 = ssub.s32 %s21, 2
        // Predicated region
        $region69: #{tpu_custom_call.1} parent=67 // pred_check
          %p886 = pneg %p228
        $region70: #{tpu_custom_call.1} parent=67 // pred_check_branch
          %888 = sbr.rel (%p886) target = $region72
        $region71: #{tpu_custom_call.1} parent=67 // pred_region
          %s889 = sand.u32 %s213, 1
          %s890 = scalar_lea.sflag [#allocation4], %s889
          %s891 = sand.u32 %s213, 1
          %s892 = smul.addr %s891, 16
          %s893 = scalar_lea.vmem [#allocation7], %s892
          %894 = dma.done %s890, 256
        $region72: #{tpu_custom_call.1} parent=67 // pred_fallthru
          _
      $region68: #{tpu_custom_call.1} parent=5 // pred_fallthru
        _
    $region6: #{tpu_custom_call.1} parent=1 // loop_footer
      %s25 = sadd.s32 1, %s21
    $region7: #{tpu_custom_call.1} parent=1 // loop_footer_branch
      %20 = sbr.rel target = $region3
    $region8: #{tpu_custom_call.1} parent=1 // loop_exit
      _
    %895 = vsyncpa [#allocation3], 1
    %s896 = scalar_lea.sflag [#allocation3], 1
    %897 = vsyncpa %s896, 1
    %898 = vsyncpa [#allocation6], 1
    %899 = vsyncpa [#allocation4], 1
    %s900 = scalar_lea.sflag [#allocation4], 1
    %901 = vsyncpa %s900, 1

</llo_original>
